<compile_context>
chip_gen: v7x
topology: tpu7x:2x2x1
jax: 0.10.0
libtpu: 0.0.40
codegen_flags: <defaults>
</compile_context>

<pallas_src>
import jax
import jax.numpy as jnp
import numpy as np
from jax.experimental import pallas as pl
from jax.experimental.pallas import tpu as pltpu

NUM_FACTORS = 5
NUM_PARTICLES = 10
_TINY = 1e-30  # guard against u == 0 -> log(0) / sqrt(0)


def _packed_layout(num_times, num_factors):
    """Flat lane layout: [weights | centers | log_widths | pad], padded to a multiple of 128."""
    w_size = num_times * num_factors
    c_size = num_factors * 3
    f_size = num_factors
    total = w_size + c_size + f_size
    lanes = ((total + 127) // 128) * 128
    return w_size, c_size, f_size, lanes


def _make_guide_kernel(fw_off, num_factors, lanes):
    """Kernel: sample = mu + eps * sqrt(u), everything packed in one 128*-lane slab."""

    def kernel(fw_mu_ref, mu_u_ref, eps_ref, out_ref):
        # Packed (2, lanes) parameter slab: row 0 = mus, row 1 = uniform noise u.
        mu = mu_u_ref[0:1, :]                                      # (1, lanes)
        u = jnp.maximum(mu_u_ref[1:2, :], jnp.float32(_TINY))      # (1, lanes)

        # Splat the factor_log_widths scalar (SMEM) into its lane segment
        # (equivalent of `means['factor_log_widths'] * ones(num_factors)`).
        lane = jax.lax.broadcasted_iota(jnp.int32, (1, lanes), 1)
        in_fw = (lane >= fw_off) & (lane < fw_off + num_factors)
        mu = jnp.where(in_fw, fw_mu_ref[0, 0], mu)

        # sigma = exp(log_sigma) = exp(log(sqrt(u))) == sqrt(u)
        sigma = jnp.sqrt(u)

        # Reparameterized Normal sample; particle broadcast is a sublane
        # broadcast of the (1, lanes) rows against the (P, lanes) noise.
        out_ref[...] = mu + eps_ref[...] * sigma

    return kernel


def tfa_guide_forward(means, u_weights, u_centers, u_widths, eps_key,
                      num_times, num_factors=NUM_FACTORS,
                      num_particles=NUM_PARTICLES, times=None):
    """JAX wrapper mimicking TFAGuide(...).forward(trace, times, num_particles)."""
    if times is None:
        times = (0, num_times)
    t0, t1 = times
    tw = t1 - t0
    K, P = num_factors, num_particles

    w_size, c_size, f_size, lanes = _packed_layout(tw, K)
    total = w_size + c_size + f_size
    fw_off = w_size + c_size

    # ---- hyperparameter packing (glue; one lane-dense slab) ----
    w_mu = means['weights'][t0:t1, :].astype(jnp.float32).reshape(-1)
    c_mu = means['factor_centers'].astype(jnp.float32).reshape(-1)
    u_w = u_weights[t0:t1, :].astype(jnp.float32).reshape(-1)
    u_c = u_centers.astype(jnp.float32).reshape(-1)
    u_f = u_widths.astype(jnp.float32).reshape(-1)

    mu_row = jnp.concatenate([w_mu, c_mu, jnp.zeros((f_size,), jnp.float32)])
    u_row = jnp.concatenate([u_w, u_c, u_f])
    pad = lanes - total
    mu_row = jnp.pad(mu_row, (0, pad))
    u_row = jnp.pad(u_row, (0, pad), constant_values=1.0)
    mu_u = jnp.stack([mu_row, u_row], axis=0)                      # (2, lanes)

    # factor_log_widths mean stays a raw scalar, delivered via SMEM.
    fw_mu = jnp.asarray(means['factor_log_widths'], jnp.float32).reshape(1, 1)

    # Per-particle standard-normal noise for the reparameterized samples.
    eps = jax.random.normal(eps_key, (P, lanes), jnp.float32)      # (P, lanes)

    out = pl.pallas_call(
        _make_guide_kernel(fw_off, K, lanes),
        out_shape=jax.ShapeDtypeStruct((P, lanes), jnp.float32),
        in_specs=[
            pl.BlockSpec(memory_space=pltpu.MemorySpace.SMEM),     # fw mu scalar
            pl.BlockSpec(memory_space=pltpu.MemorySpace.VMEM),     # packed mu / u slab
            pl.BlockSpec(memory_space=pltpu.MemorySpace.VMEM),     # eps noise
        ],
        out_specs=pl.BlockSpec(memory_space=pltpu.MemorySpace.VMEM),
    )(fw_mu, mu_u, eps)

    weights = out[:, :w_size].reshape(P, tw, K)
    centers = out[:, w_size:w_size + c_size].reshape(P, K, 3)
    log_widths = out[:, fw_off:fw_off + f_size]
    return weights, centers, log_widths


if __name__ == "__main__":
    num_times = 8
    num_factors = NUM_FACTORS        # 5
    num_particles = NUM_PARTICLES    # 10

    key = jax.random.PRNGKey(0)
    k1, k2, k3, k4, k5, k_eps = jax.random.split(key, 6)

    # deterministic "means" (stand-ins for the TFA initialization means)
    means = {
        'weights': jax.random.normal(k1, (num_times, num_factors), jnp.float32),
        'factor_centers': jax.random.normal(k2, (num_factors, 3), jnp.float32),
        'factor_log_widths': jnp.float32(2.0),   # scalar, broadcast to ones(num_factors)
    }
    # deterministic stand-ins for the torch.rand(...) draws in log_sigma init
    u_weights = jax.random.uniform(k3, (num_times, num_factors), jnp.float32)
    u_centers = jax.random.uniform(k4, (num_factors, 3), jnp.float32)
    u_widths = jax.random.uniform(k5, (num_factors,), jnp.float32)

    weights, centers, log_widths = tfa_guide_forward(
        means, u_weights, u_centers, u_widths, k_eps,
        num_times, num_factors, num_particles)
    jax.tree_util.tree_map(jax.block_until_ready, (weights, centers, log_widths))

    # ---- pure-JAX reference mirroring the torch path ----
    P, T, K = num_particles, num_times, num_factors
    w_size, c_size, f_size, lanes = _packed_layout(T, K)
    eps = jax.random.normal(k_eps, (P, lanes), jnp.float32)
    eps_w = eps[:, :w_size].reshape(P, T, K)
    eps_c = eps[:, w_size:w_size + c_size].reshape(P, K, 3)
    eps_f = eps[:, w_size + c_size:w_size + c_size + f_size]

    def sigma(u):
        # torch: exp(log(sqrt(u)))
        return jnp.exp(jnp.log(jnp.sqrt(jnp.maximum(u, _TINY))))

    ref_w = means['weights'][None] + eps_w * sigma(u_weights)[None]
    ref_c = means['factor_centers'][None] + eps_c * sigma(u_centers)[None]
    ref_f = ((means['factor_log_widths'] * jnp.ones((K,), jnp.float32))[None]
             + eps_f * sigma(u_widths)[None])

    np.testing.assert_allclose(np.asarray(weights), np.asarray(ref_w), rtol=1e-5, atol=1e-6)
    np.testing.assert_allclose(np.asarray(centers), np.asarray(ref_c), rtol=1e-5, atol=1e-6)
    np.testing.assert_allclose(np.asarray(log_widths), np.asarray(ref_f), rtol=1e-5, atol=1e-6)

    print("KERNEL_OK")
</pallas_src>

<mosaic_0001>
module attributes {stable_mosaic.version = 11 : i64} {
  func.func @kernel(%arg0: memref<1x1xf32, #tpu.memory_space<smem>>, %arg1: memref<2x128xf32, #tpu.memory_space<vmem>>, %arg2: memref<10x128xf32, #tpu.memory_space<vmem>>, %arg3: memref<10x128xf32, #tpu.memory_space<vmem>>) attributes {dimension_semantics = [], scalar_prefetch = 0 : i64, scratch_operands = 0 : i64, tpu.core_type = #tpu.core_type<tc>} {
    %c0 = arith.constant 0 : index
    %c0_0 = arith.constant 0 : index
    %0 = vector.load %arg1[%c0, %c0_0] : memref<2x128xf32, #tpu.memory_space<vmem>>, vector<1x128xf32>
    %c1 = arith.constant 1 : index
    %c0_1 = arith.constant 0 : index
    %1 = vector.load %arg1[%c1, %c0_1] : memref<2x128xf32, #tpu.memory_space<vmem>>, vector<1x128xf32>
    %cst = arith.constant 1.000000e-30 : f32
    %2 = vector.broadcast %cst : f32 to vector<1x128xf32>
    %3 = arith.maximumf %1, %2 : vector<1x128xf32>
    %4 = tpu.iota {dimensions = array<i32: 1>} : vector<1x128xi32>
    %c55_i32 = arith.constant 55 : i32
    %5 = vector.broadcast %c55_i32 : i32 to vector<1x128xi32>
    %6 = arith.cmpi sge, %4, %5 : vector<1x128xi32>
    %c60_i32 = arith.constant 60 : i32
    %7 = vector.broadcast %c60_i32 : i32 to vector<1x128xi32>
    %8 = arith.cmpi slt, %4, %7 : vector<1x128xi32>
    %9 = arith.andi %6, %8 : vector<1x128xi1>
    %c0_2 = arith.constant 0 : index
    %c0_3 = arith.constant 0 : index
    %10 = memref.load %arg0[%c0_2, %c0_3] : memref<1x1xf32, #tpu.memory_space<smem>>
    %11 = vector.broadcast %10 : f32 to vector<1x128xf32>
    %12 = arith.select %9, %11, %0 : vector<1x128xi1>, vector<1x128xf32>
    %13 = math.sqrt %3 : vector<1x128xf32>
    %c0_4 = arith.constant 0 : index
    %c0_5 = arith.constant 0 : index
    %14 = vector.load %arg2[%c0_4, %c0_5] : memref<10x128xf32, #tpu.memory_space<vmem>>, vector<10x128xf32>
    %15 = vector.broadcast %13 : vector<1x128xf32> to vector<10x128xf32>
    %16 = arith.mulf %14, %15 : vector<10x128xf32>
    %17 = vector.broadcast %12 : vector<1x128xf32> to vector<10x128xf32>
    %18 = arith.addf %17, %16 : vector<10x128xf32>
    %c0_6 = arith.constant 0 : index
    %c0_7 = arith.constant 0 : index
    %19 = vector.load %arg3[%c0_6, %c0_7] : memref<10x128xf32, #tpu.memory_space<vmem>>, vector<10x128xf32>
    tpu.vector_store %arg3[%c0_6, %c0_7], %18 {strides = array<i32>} : memref<10x128xf32, #tpu.memory_space<vmem>>, vector<10x128xf32>,
    return
  }
}

</mosaic_0001>

<llo_original>
// kernel: tpu_custom_call.1
$region0: #{tpu_custom_call.1}
  #allocation0 [shape = 'u32[]', space=smem, size = 0x4, offset = 0x4, fixed_abs, tag = 'smem constant byte address 0x4 - core index']
  #allocation1 [shape = 'u32[144,128]{1,0:T(1,128)}', space=vmem, size = 0x12000, scoped, tag = 'internal scratch']
  #allocation2 [shape = 'f32[1,1]{1,0:T(1,128)S(6)}', space=smem, size = 0x200, scoped, tag = 'scoped memory for tpu_custom_call.1']
  %s0 = inlined_call_operand.<no memory space> [shape: f32[1,1], index: 0, kind: input, shape index: {}]
  %s1 = inlined_call_operand.vmem [shape: f32[2,128], index: 1, kind: input, shape index: {}]
  %s2 = inlined_call_operand.hbm [shape: f32[10,128], index: 2, kind: input, shape index: {}]
  %s3 = inlined_call_operand.hbm [shape: f32[10,128], index: 3, kind: output, shape index: {}]
  %s4 = sld [smem:[#allocation0]]
  $region26: #{tpu_custom_call.1} parent=0
    _
  %s6 = ssub.s32 1, %s4
  %s7 = scalar_select 0, %s6, %s4
  %8 = sst [smem:[#allocation2]] %s0
  $region1: #{tpu_custom_call.1} parent=0
    #allocation3 [shape = 'u8[8192]{0}', space=vmem, size = 0x2000, scoped, tag = 'input window, operand 2, single buffered']
    #allocation4 [shape = 's32[1]{0}', space=sflag, size = 0x4, scoped, tag = 'scoped memory for tpu_custom_call.1']
    #allocation5 [shape = 's32[1]{0}', space=sflag, size = 0x4, scoped, tag = 'scoped memory for tpu_custom_call.1']
    #allocation6 [shape = 'u8[8192]{0}', space=vmem, size = 0x2000, scoped, tag = 'output window, operand 0, single buffered']
    %9 = vsyncpa [#allocation4], 0
    %10 = vsyncpa [#allocation5], 0
    // Predicated region
    $region2: #{tpu_custom_call.1} parent=1 // pred_check
      _
    $region3: #{tpu_custom_call.1} parent=1 // pred_check_branch
      %12 = sbr.rel (0) target = $region5
    $region4: #{tpu_custom_call.1} parent=1 // pred_region
      _
    $region5: #{tpu_custom_call.1} parent=1 // pred_fallthru
      _
    // Predicated region
    $region6: #{tpu_custom_call.1} parent=1 // pred_check
      _
    $region7: #{tpu_custom_call.1} parent=1 // pred_check_branch
      %14 = sbr.rel (0) target = $region9
    $region8: #{tpu_custom_call.1} parent=1 // pred_region
      _
    $region9: #{tpu_custom_call.1} parent=1 // pred_fallthru
      _
    // Predicated region
    $region10: #{tpu_custom_call.1} parent=1 // pred_check
      _
    $region11: #{tpu_custom_call.1} parent=1 // pred_check_branch
      %16 = sbr.rel (0) target = $region13
    $region12: #{tpu_custom_call.1} parent=1 // pred_region
      %s18 = ssub.s32 256, 256
      %19 = vsyncadd [#allocation4], %s18
      %s20 = sshll.u32 [#allocation3], 4
      %s21 = int_to_ptr.vmem [resolvable:$true] %s20
      %26 = dma.hbm_to_vmem [thread:$0]  %s2, 256, %s21, [#allocation4], 128, 128, 8
    $region13: #{tpu_custom_call.1} parent=1 // pred_fallthru
      _
    // Predicated region
    $region14: #{tpu_custom_call.1} parent=1 // pred_check
      _
    $region15: #{tpu_custom_call.1} parent=1 // pred_check_branch
      %28 = sbr.rel (0) target = $region17
    $region16: #{tpu_custom_call.1} parent=1 // pred_region
      %29 = dma.done [#allocation4], 256
    $region17: #{tpu_custom_call.1} parent=1 // pred_fallthru
      _
    %v30 = vld [vmem:[%s1] sm:$0x1]
    %v31 = vld [vmem:[%s1 + $0x1] sm:$0x1]
    %v32 = vmax.f32 %v31, 1e-30
    %v33 = vlaneseq
    %v34 = vand.u32 %v33, 127
    %vm35 = vcmp.ge.s32.totalorder %v34, 55
    %vm36 = vcmp.lt.s32.totalorder %v34, 60
    %vm37 = vmand %vm35, %vm36
    %s38 = sld [smem:[#allocation2]]
    %v39 = vstv %s38
    %v40 = vsel %vm37, %v39, %v30
    %v41 = vrsqrt.pop %v32
    %v42 = vmul.f32 %v32, %v41
    %vm43 = vcmp.eq.f32.partialorder %v32, inf
    %v44 = vsel %vm43, %v32, %v42
    %vm45 = vcmp.eq.f32.partialorder %v32, 0.0
    %v46 = vand.u32 %v32, 2147483648
    %v47 = vsel %vm45, %v46, %v44
    %v48 = vld [vmem:[#allocation3] sm:$0xff]
    %v49 = vld [vmem:[#allocation3 + $0x8] sm:$0x3]
    %v50 = vlaneseq
    %v51 = vshrl.u32 %v50, 7
    %v52 = vsub.s32 0, %v51
    %v53 = vrot.slane %v47, %v52
    %v54 = vmul.f32 %v48, %v53
    %v55 = vmul.f32 %v49, %v53
    %v56 = vlaneseq
    %v57 = vshrl.u32 %v56, 7
    %v58 = vsub.s32 0, %v57
    %v59 = vrot.slane %v40, %v58
    %v60 = vadd.f32 %v59, %v54
    %v61 = vadd.f32 %v59, %v55
    %62 = vst [vmem:[#allocation6] sm:$0xff] %v60
    %63 = vst [vmem:[#allocation6 + $0x8] sm:$0x3] %v61
    // Predicated region
    $region18: #{tpu_custom_call.1} parent=1 // pred_check
      _
    $region19: #{tpu_custom_call.1} parent=1 // pred_check_branch
      %65 = sbr.rel (0) target = $region21
    $region20: #{tpu_custom_call.1} parent=1 // pred_region
      %s67 = ssub.s32 256, 256
      %68 = vsyncadd [#allocation5], %s67
      %s69 = sshll.u32 [#allocation6], 4
      %s70 = int_to_ptr.vmem [resolvable:$true] %s69
      %75 = dma.vmem_to_hbm [thread:$0]  %s70, 256, %s3, [#allocation5], 128, 128, 8
    $region21: #{tpu_custom_call.1} parent=1 // pred_fallthru
      _
    // Predicated region
    $region22: #{tpu_custom_call.1} parent=1 // pred_check
      _
    $region23: #{tpu_custom_call.1} parent=1 // pred_check_branch
      %77 = sbr.rel (0) target = $region25
    $region24: #{tpu_custom_call.1} parent=1 // pred_region
      %78 = dma.done [#allocation5], 256
    $region25: #{tpu_custom_call.1} parent=1 // pred_fallthru
      _
    %79 = vsyncpa [#allocation4], 1
    %80 = vsyncpa [#allocation5], 1

</llo_original>
